<compile_context>
chip_gen: v5e
topology: v5e:2x2
jax: 0.10.0
libtpu: 0.0.40
codegen_flags: <defaults>
</compile_context>

<pallas_src>
import jax
import jax.numpy as jnp
from jax import lax
from jax.experimental import pallas as pl
from jax.experimental.pallas import tpu as pltpu


# Contract last dim of x (tm, tk) with last dim of W (tn, tk) -> (tm, tn).
_CONTRACT_LAST = (((1,), (1,)), ((), ()))


def _bridge_kernel_single_k(x_ref, w_ref, o_ref):
    # x_ref: (tm, K)   w_ref: (tn, K)   o_ref: (tm, tn)
    acc = lax.dot_general(
        x_ref[...], w_ref[...], _CONTRACT_LAST, preferred_element_type=jnp.float32
    )
    o_ref[...] = jnp.tanh(acc).astype(o_ref.dtype)


def _bridge_kernel_multi_k(x_ref, w_ref, o_ref, acc_ref):
    # x_ref: (tm, tk)   w_ref: (tn, tk)   o_ref/acc_ref: (tm, tn)
    @pl.when(pl.program_id(2) == 0)
    def _init():
        acc_ref[...] = jnp.zeros_like(acc_ref)

    acc_ref[...] += lax.dot_general(
        x_ref[...], w_ref[...], _CONTRACT_LAST, preferred_element_type=jnp.float32
    )

    @pl.when(pl.program_id(2) == pl.num_programs(2) - 1)
    def _finalize():
        o_ref[...] = jnp.tanh(acc_ref[...]).astype(o_ref.dtype)


def _round_up(x: int, m: int) -> int:
    return ((x + m - 1) // m) * m


def _sublane_granule(dtype) -> int:
    # 8 rows/sublane-tile for f32, 16 for bf16, 32 for int8/fp8.
    return max(8, 32 // jnp.dtype(dtype).itemsize)


def _tile_and_pad(dim: int, pref: int, granule: int) -> tuple[int, int]:
    """Pick a tile (multiple of `granule`, <= pref unless dim is smaller) and
    the padded extent that the tile divides exactly."""
    if dim <= pref:
        tile = _round_up(dim, granule)
    else:
        tile = max((pref // granule) * granule, granule)
    return tile, _round_up(dim, tile)


def _tpu_defaults() -> dict:
    """Generation-aware tile sizes and VMEM limit."""
    vmem_capacity = 64 << 20
    try:
        info = pltpu.get_tpu_info()
        vmem_capacity = int(getattr(info, "vmem_capacity_bytes", vmem_capacity))
    except Exception:
        pass
    if vmem_capacity >= (96 << 20):
        # v5e / v6e: 128 MiB physical VMEM — bigger tiles amortize per-step
        # overhead and cut HBM re-reads; 256-aligned N/K feed full MXU passes.
        return dict(tm=1024, tn=512, tk=1024, vmem_limit=96 << 20)
    # v7x (64 MiB / TC) or unknown: keep headroom for compiler scratch and
    # double-buffering (footprint of these tiles is only a few MiB).
    return dict(tm=512, tn=256, tk=512, vmem_limit=48 << 20)


def bridge_forward(
    x: jax.Array,
    weight: jax.Array,
    *,
    tm: int | None = None,
    tn: int | None = None,
    tk: int | None = None,
    vmem_limit_bytes: int | None = None,
) -> jax.Array:
    """Equivalent of Bridge.forward: tanh(x @ weight.T), weight: (out, in)."""
    K = x.shape[-1]
    N, Kw = weight.shape
    if Kw != K:
        raise ValueError("weight must have shape (output_size, input_size)")

    lead_shape = x.shape[:-1]
    x2 = x.reshape(-1, K)  # (M, K)
    M = x2.shape[0]
    out_dtype = x2.dtype

    d = _tpu_defaults()
    tm = d["tm"] if tm is None else tm
    tn = d["tn"] if tn is None else tn
    tk = d["tk"] if tk is None else tk
    vmem_limit = d["vmem_limit"] if vmem_limit_bytes is None else vmem_limit_bytes

    # Granules: tm is a sublane dim (x & out blocks) -> dtype-aware;
    # tn is the out-lane dim (and weight-sublane dim) -> 128;
    # tk is the lane dim of both x and weight blocks -> 128.
    tm, M_pad = _tile_and_pad(M, tm, _sublane_granule(out_dtype))
    tn, N_pad = _tile_and_pad(N, tn, 128)
    tk, K_pad = _tile_and_pad(K, tk, 128)

    # Zero-pad so every tile is full.  Zero K-padding contributes nothing to
    # the dot product; padded M rows / N cols are sliced off below.  Padding N
    # to >=128 also keeps the output lane-dense (unmasked vst).
    if (M_pad, K_pad) != (M, K):
        x2 = jnp.pad(x2, ((0, M_pad - M), (0, K_pad - K)))
    w = weight
    if (N_pad, K_pad) != (N, K):
        w = jnp.pad(w, ((0, N_pad - N), (0, K_pad - K)))

    gm, gn, gk = M_pad // tm, N_pad // tn, K_pad // tk

    itemsize = jnp.dtype(out_dtype).itemsize
    cost = pl.CostEstimate(
        flops=2 * M * N * K,
        transcendentals=M * N,
        bytes_accessed=(M_pad * K_pad + N_pad * K_pad * gm + M_pad * N_pad) * itemsize,
    )

    if gk == 1:
        # K fits in a single block: no accumulator scratch, no predication,
        # and the weight block index is constant across the i sweep.
        out = pl.pallas_call(
            _bridge_kernel_single_k,
            out_shape=jax.ShapeDtypeStruct((M_pad, N_pad), out_dtype),
            grid_spec=pltpu.PrefetchScalarGridSpec(
                num_scalar_prefetch=0,
                grid=(gm, gn),
                in_specs=[
                    pl.BlockSpec((tm, K_pad), lambda i, j: (i, 0)),  # x rows
                    pl.BlockSpec((tn, K_pad), lambda i, j: (j, 0)),  # W rows
                ],
                out_specs=pl.BlockSpec((tm, tn), lambda i, j: (i, j)),
            ),
            compiler_params=pltpu.CompilerParams(
                dimension_semantics=("parallel", "parallel"),
                vmem_limit_bytes=vmem_limit,
            ),
            cost_estimate=cost,
        )(x2, w)
    else:
        out = pl.pallas_call(
            _bridge_kernel_multi_k,
            out_shape=jax.ShapeDtypeStruct((M_pad, N_pad), out_dtype),
            grid_spec=pltpu.PrefetchScalarGridSpec(
                num_scalar_prefetch=0,
                grid=(gm, gn, gk),
                in_specs=[
                    pl.BlockSpec((tm, tk), lambda i, j, k: (i, k)),  # x tile
                    pl.BlockSpec((tn, tk), lambda i, j, k: (j, k)),  # W tile
                ],
                out_specs=pl.BlockSpec((tm, tn), lambda i, j, k: (i, j)),
                scratch_shapes=[pltpu.VMEM((tm, tn), jnp.float32)],
            ),
            compiler_params=pltpu.CompilerParams(
                dimension_semantics=("parallel", "parallel", "arbitrary"),
                vmem_limit_bytes=vmem_limit,
            ),
            cost_estimate=cost,
        )(x2, w)

    if (M_pad, N_pad) != (M, N):
        out = out[:M, :N]
    return out.reshape(lead_shape + (N,))


if __name__ == "__main__":
    key = jax.random.PRNGKey(0)
    k_w, k_x = jax.random.split(key)

    B, S = 2, 8
    input_size, output_size = 32, 64

    # nn.Linear-style init: U(-1/sqrt(in), 1/sqrt(in)), no bias.
    bound = 1.0 / (input_size ** 0.5)
    weight = jax.random.uniform(
        k_w, (output_size, input_size), dtype=jnp.float32,
        minval=-bound, maxval=bound,
    )
    x = jax.random.normal(k_x, (B, S, input_size), dtype=jnp.float32)

    out = bridge_forward(x, weight)
    out = jax.block_until_ready(out)

    # Correctness check against the plain-JAX reference of tanh(linear(x)).
    ref = jnp.tanh(jnp.matmul(x, weight.T))
    assert out.shape == ref.shape == (B, S, output_size)
    assert jnp.allclose(out, ref, atol=1e-5, rtol=1e-5)

    print("KERNEL_OK")
</pallas_src>

<mosaic_0001>
module attributes {stable_mosaic.version = 11 : i64} {
  func.func @_bridge_kernel_single_k(%arg0: i32, %arg1: i32, %arg2: memref<16x128xf32, #tpu.memory_space<vmem>>, %arg3: memref<128x128xf32, #tpu.memory_space<vmem>>, %arg4: memref<16x128xf32, #tpu.memory_space<vmem>>) attributes {dimension_semantics = [#tpu.dimension_semantics<parallel>, #tpu.dimension_semantics<parallel>], iteration_bounds = array<i64: 1, 1>, scalar_prefetch = 0 : i64, scratch_operands = 0 : i64, tpu.core_type = #tpu.core_type<tc>, window_params = [{transform_indices = @transform_0, window_bounds = array<i64: 16, 128>}, {transform_indices = @transform_1, window_bounds = array<i64: 128, 128>}, {transform_indices = @transform_2, window_bounds = array<i64: 16, 128>}]} {
    %c0 = arith.constant 0 : index
    %c0_0 = arith.constant 0 : index
    %0 = vector.load %arg2[%c0, %c0_0] : memref<16x128xf32, #tpu.memory_space<vmem>>, vector<16x128xf32>
    %c0_1 = arith.constant 0 : index
    %c0_2 = arith.constant 0 : index
    %1 = vector.load %arg3[%c0_1, %c0_2] : memref<128x128xf32, #tpu.memory_space<vmem>>, vector<128x128xf32>
    %cst = arith.constant dense<0.000000e+00> : vector<16x128xf32>
    %2 = tpu.matmul %0, %1, %cst {dimension_numbers = #tpu.dot_dimension_numbers<[1], [1], [0], [0], [0, 0, 1, 0], [], []>} : vector<16x128xf32>, vector<128x128xf32>, vector<16x128xf32> -> vector<16x128xf32>
    %3 = math.tanh %2 : vector<16x128xf32>
    %c0_3 = arith.constant 0 : index
    %c0_4 = arith.constant 0 : index
    %4 = vector.load %arg4[%c0_3, %c0_4] : memref<16x128xf32, #tpu.memory_space<vmem>>, vector<16x128xf32>
    tpu.vector_store %arg4[%c0_3, %c0_4], %3 {strides = array<i32>} : memref<16x128xf32, #tpu.memory_space<vmem>>, vector<16x128xf32>,
    return
  }
  func.func @transform_0(%arg0: i32, %arg1: i32) -> (i32, i32) {
    %c0_i32 = arith.constant 0 : i32
    %c0_i32_0 = arith.constant 0 : i32
    return %arg0, %c0_i32 : i32, i32
  }
  func.func @transform_1(%arg0: i32, %arg1: i32) -> (i32, i32) {
    %c0_i32 = arith.constant 0 : i32
    %c0_i32_0 = arith.constant 0 : i32
    return %arg1, %c0_i32 : i32, i32
  }
  func.func @transform_2(%arg0: i32, %arg1: i32) -> (i32, i32) {
    %c0_i32 = arith.constant 0 : i32
    return %arg0, %arg1 : i32, i32
  }
}

</mosaic_0001>

<llo_original>
// kernel: tpu_custom_call.1
$region0: #{tpu_custom_call.1}
  #allocation0 [shape = 'u32[]', space=smem, size = 0x4, offset = 0x4, fixed_abs, tag = 'smem constant byte address 0x4 - core index']
  #allocation1 [shape = 'u32[72,128]{1,0:T(1,128)}', space=vmem, size = 0x9000, scoped, tag = 'internal scratch']
  %s0 = inlined_call_operand.hbm [shape: f32[16,128], index: 0, kind: input, shape index: {}]
  %s1 = inlined_call_operand.hbm [shape: f32[128,128], index: 1, kind: input, shape index: {}]
  %s2 = inlined_call_operand.hbm [shape: f32[16,128], index: 2, kind: output, shape index: {}]
  %s3 = sld [smem:[#allocation0]]
  $region26: #{tpu_custom_call.1} parent=0
    _
  %s5 = ssub.s32 1, %s3
  %s6 = scalar_select 0, %s5, %s3
  $region1: #{tpu_custom_call.1} parent=0
    #allocation2 [shape = 'u8[8192]{0}', space=vmem, size = 0x2000, scoped, tag = 'input window, operand 0, single buffered']
    #allocation3 [shape = 's32[1]{0}', space=sflag, size = 0x4, scoped, tag = 'scoped memory for tpu_custom_call.1']
    #allocation4 [shape = 's32[1]{0}', space=sflag, size = 0x4, scoped, tag = 'scoped memory for tpu_custom_call.1']
    #allocation5 [shape = 'u8[65536]{0}', space=vmem, size = 0x10000, scoped, tag = 'input window, operand 1, single buffered']
    #allocation6 [shape = 's32[1]{0}', space=sflag, size = 0x4, scoped, tag = 'scoped memory for tpu_custom_call.1']
    #allocation7 [shape = 'u8[8192]{0}', space=vmem, size = 0x2000, scoped, tag = 'output window, operand 0, single buffered']
    %7 = vsyncpa [#allocation3], 0
    %8 = vsyncpa [#allocation6], 0
    %9 = vsyncpa [#allocation4], 0
    // Predicated region
    $region2: #{tpu_custom_call.1} parent=1 // pred_check
      _
    $region3: #{tpu_custom_call.1} parent=1 // pred_check_branch
      %11 = sbr.rel (0) target = $region5
    $region4: #{tpu_custom_call.1} parent=1 // pred_region
      %13 = vsyncadd [#allocation3], 0
      %s14 = sshll.u32 %s0, 4
      %s15 = int_to_ptr.hbm [resolvable:$true] %s14
      %s16 = sshll.u32 [#allocation2], 4
      %s17 = int_to_ptr.vmem [resolvable:$true] %s16
      %22 = dma.hbm_to_vmem [thread:$0]  %s15, 256, %s17, [#allocation3], 128, 128, 8
    $region5: #{tpu_custom_call.1} parent=1 // pred_fallthru
      _
    // Predicated region
    $region6: #{tpu_custom_call.1} parent=1 // pred_check
      _
    $region7: #{tpu_custom_call.1} parent=1 // pred_check_branch
      %24 = sbr.rel (0) target = $region9
    $region8: #{tpu_custom_call.1} parent=1 // pred_region
      %26 = vsyncadd [#allocation6], 0
      %s27 = sshll.u32 %s1, 4
      %s28 = int_to_ptr.hbm [resolvable:$true] %s27
      %s29 = sshll.u32 [#allocation5], 4
      %s30 = int_to_ptr.vmem [resolvable:$true] %s29
      %35 = dma.hbm_to_vmem [thread:$0]  %s28, 2048, %s30, [#allocation6], 128, 128, 8
    $region9: #{tpu_custom_call.1} parent=1 // pred_fallthru
      _
    // Predicated region
    $region10: #{tpu_custom_call.1} parent=1 // pred_check
      _
    $region11: #{tpu_custom_call.1} parent=1 // pred_check_branch
      %37 = sbr.rel (0) target = $region13
    $region12: #{tpu_custom_call.1} parent=1 // pred_region
      %39 = dma.done [#allocation3], 256
    $region13: #{tpu_custom_call.1} parent=1 // pred_fallthru
      _
    // Predicated region
    $region14: #{tpu_custom_call.1} parent=1 // pred_check
      _
    $region15: #{tpu_custom_call.1} parent=1 // pred_check_branch
      %41 = sbr.rel (0) target = $region17
    $region16: #{tpu_custom_call.1} parent=1 // pred_region
      %43 = dma.done [#allocation6], 2048
    $region17: #{tpu_custom_call.1} parent=1 // pred_fallthru
      _
    %v44 = vld [vmem:[#allocation2] sm:$0xff]
    %v45 = vld [vmem:[#allocation2 + $0x8] sm:$0xff]
    %v46 = vld [vmem:[#allocation5] sm:$0xff]
    %v47 = vld [vmem:[#allocation5 + $0x8] sm:$0xff]
    %v48 = vld [vmem:[#allocation5 + $0x10] sm:$0xff]
    %v49 = vld [vmem:[#allocation5 + $0x18] sm:$0xff]
    %v50 = vld [vmem:[#allocation5 + $0x20] sm:$0xff]
    %v51 = vld [vmem:[#allocation5 + $0x28] sm:$0xff]
    %v52 = vld [vmem:[#allocation5 + $0x30] sm:$0xff]
    %v53 = vld [vmem:[#allocation5 + $0x38] sm:$0xff]
    %v54 = vld [vmem:[#allocation5 + $0x40] sm:$0xff]
    %v55 = vld [vmem:[#allocation5 + $0x48] sm:$0xff]
    %v56 = vld [vmem:[#allocation5 + $0x50] sm:$0xff]
    %v57 = vld [vmem:[#allocation5 + $0x58] sm:$0xff]
    %v58 = vld [vmem:[#allocation5 + $0x60] sm:$0xff]
    %v59 = vld [vmem:[#allocation5 + $0x68] sm:$0xff]
    %v60 = vld [vmem:[#allocation5 + $0x70] sm:$0xff]
    %v61 = vld [vmem:[#allocation5 + $0x78] sm:$0xff]
    %62 = vmatpush.xpose.msra.mxu0 %v61
    %63 = vmatpush.xpose.msra.mxu0 %v60
    %64 = vmatpush.xpose.msra.mxu0 %v59
    %65 = vmatpush.xpose.msra.mxu0 %v58
    %66 = vmatpush.xpose.msra.mxu0 %v57
    %67 = vmatpush.xpose.msra.mxu0 %v56
    %68 = vmatpush.xpose.msra.mxu0 %v55
    %69 = vmatpush.xpose.msra.mxu0 %v54
    %70 = vmatpush.xpose.msra.mxu0 %v53
    %71 = vmatpush.xpose.msra.mxu0 %v52
    %72 = vmatpush.xpose.msra.mxu0 %v51
    %73 = vmatpush.xpose.msra.mxu0 %v50
    %74 = vmatpush.xpose.msra.mxu0 %v49
    %75 = vmatpush.xpose.msra.mxu0 %v48
    %76 = vmatpush.xpose.msra.mxu0 %v47
    %77 = vmatpush.xpose.msra.mxu0 %v46
    %78 = vmatmul.f32.gmra.mxu0 %v44
    %v79 = vpop.f32.mrf.mxu0
    %v80 = vadd.f32 0.0, %v79
    %81 = vmatmul.f32.gmra.mxu0 %v45
    %v82 = vpop.f32.mrf.mxu0
    %v83 = vadd.f32 0.0, %v82
    %84 = vdwg.mxu0
    %v85 = vtanh.pop %v80
    %v86 = vtanh.pop %v83
    %87 = vst [vmem:[#allocation7] sm:$0xff] %v85
    %88 = vst [vmem:[#allocation7 + $0x8] sm:$0xff] %v86
    // Predicated region
    $region18: #{tpu_custom_call.1} parent=1 // pred_check
      _
    $region19: #{tpu_custom_call.1} parent=1 // pred_check_branch
      %90 = sbr.rel (0) target = $region21
    $region20: #{tpu_custom_call.1} parent=1 // pred_region
      %92 = vsyncadd [#allocation4], 0
      %s93 = sshll.u32 [#allocation7], 4
      %s94 = int_to_ptr.vmem [resolvable:$true] %s93
      %s95 = sshll.u32 %s2, 4
      %s96 = int_to_ptr.hbm [resolvable:$true] %s95
      %101 = dma.vmem_to_hbm [thread:$0]  %s94, 256, %s96, [#allocation4], 128, 128, 8
    $region21: #{tpu_custom_call.1} parent=1 // pred_fallthru
      _
    // Predicated region
    $region22: #{tpu_custom_call.1} parent=1 // pred_check
      _
    $region23: #{tpu_custom_call.1} parent=1 // pred_check_branch
      %103 = sbr.rel (0) target = $region25
    $region24: #{tpu_custom_call.1} parent=1 // pred_region
      %105 = dma.done [#allocation4], 256
    $region25: #{tpu_custom_call.1} parent=1 // pred_fallthru
      _
    %106 = vsyncpa [#allocation3], 1
    %107 = vsyncpa [#allocation6], 1
    %108 = vsyncpa [#allocation4], 1

</llo_original>
